<compile_context>
chip_gen: v7x
topology: tpu7x:2x2x1
jax: 0.10.0
libtpu: 0.0.40
codegen_flags: <defaults>
</compile_context>

<pallas_src>
import jax
import jax.numpy as jnp
import numpy as np
from jax import lax
from jax.experimental import pallas as pl
from jax.experimental.pallas import tpu as pltpu


def _round_up(x, m):
    return ((x + m - 1) // m) * m


def critic_kernel(s_ref, a_ref, w1_ref, b1_ref, w2s_ref, w2a_ref, b2_ref,
                  w3_ref, b3_ref, o_ref):
    # Contract on the feature axis of the native-layout (TILE_B, feat) blocks:
    # h = W @ x^T without ever materializing a transposed copy in HBM.
    dims = (((1,), (1,)), ((), ()))
    s = s_ref[...].astype(jnp.bfloat16)            # (TILE_B, IN)  bf16 for MXU
    a = a_ref[...].astype(jnp.bfloat16)            # (TILE_B, ACT)

    # fc1: (H1, IN) x (TILE_B, IN) -> (H1, TILE_B), f32 accumulation on MXU.
    h1 = lax.dot_general(w1_ref[...], s, dims, preferred_element_type=jnp.float32)
    h1 = jnp.maximum(h1 + b1_ref[...], 0.0)        # bias + relu in f32 (VPU)
    h1 = h1.astype(jnp.bfloat16)                   # back to bf16 for the MXU

    # fc2 on concat([h1, actions]) == W2s @ h1 + W2a @ actions^T.
    h2 = (jnp.dot(w2s_ref[...], h1, preferred_element_type=jnp.float32)
          + lax.dot_general(w2a_ref[...], a, dims,
                            preferred_element_type=jnp.float32)
          + b2_ref[...])
    h2 = jnp.maximum(h2, 0.0)                      # (H2, TILE_B) f32

    # fc3 (output width 1): VPU broadcast-multiply + XLU sublane reduce.
    # Result is a lane-dense (1, TILE_B) row -> unmasked wide store.
    o_ref[...] = jnp.sum(h2 * w3_ref[...], axis=0, keepdims=True) + b3_ref[...]


def _batch_axis_semantics(num_blocks):
    """CORE_PARALLEL only changes codegen on 2-TensorCore chips (v7x)."""
    if num_blocks < 2:
        return ("arbitrary",)
    try:
        kind = jax.devices()[0].device_kind.lower()
    except Exception:
        kind = ""
    if "7" in kind:                       # e.g. "tpu7x": 2 TCs share the grid
        return (pltpu.CORE_PARALLEL,)
    return ("parallel",)                  # measured no-op vs "arbitrary"


def critic_forward(states, actions, params, *, tile_b=8192):
    """states: (B, input_size), actions: (B, action_size) -> (B, 1) float32."""
    B, input_size = states.shape
    action_size = actions.shape[1]
    w1, b1, w2s, w2a, b2, w3, b3 = params
    h1n, h2n = w1.shape[0], w2s.shape[0]

    # Pad B only up to a lane multiple (<=127 wasted rows).  The last grid tile
    # may be partial; Pallas masks out-of-range reads/writes of that block.
    padded_b = _round_up(B, 128)
    tile_b = min(_round_up(tile_b, 128), padded_b)
    grid = (pl.cdiv(padded_b, tile_b),)

    s = jnp.asarray(states, jnp.float32)
    a = jnp.asarray(actions, jnp.float32)
    if padded_b != B:
        s = jnp.pad(s, ((0, padded_b - B), (0, 0)))
        a = jnp.pad(a, ((0, padded_b - B), (0, 0)))

    # Weights stay VMEM-resident for the whole call; bf16 MXU operands.
    w1_b, w2s_b, w2a_b = (w.astype(jnp.bfloat16) for w in (w1, w2s, w2a))

    # Advisory cost model so XLA can schedule/overlap around the custom call.
    flops = 2 * padded_b * (h1n * input_size + h2n * h1n + h2n * action_size + h2n)
    bytes_accessed = (padded_b * (4 * input_size + 4 * action_size + 4)
                      + 2 * (w1_b.size + w2s_b.size + w2a_b.size)
                      + 4 * (b1.size + b2.size + w3.size + b3.size))
    cost = pl.CostEstimate(flops=int(flops), transcendentals=0,
                           bytes_accessed=int(bytes_accessed))

    def launch(dim_semantics, buffer_depth):
        extra = {}
        if buffer_depth is not None:
            extra = dict(pipeline_mode=pl.Buffered(buffer_depth))
        stream_in = lambda cols: pl.BlockSpec((tile_b, cols), lambda i: (i, 0),
                                              **extra)
        out_spec = pl.BlockSpec((1, tile_b), lambda i: (0, i), **extra)
        resident = lambda arr: pl.BlockSpec(arr.shape, lambda i: (0, 0))
        return pl.pallas_call(
            critic_kernel,
            grid=grid,
            out_shape=jax.ShapeDtypeStruct((1, padded_b), jnp.float32),
            in_specs=[
                stream_in(input_size),                       # states  (streamed)
                stream_in(action_size),                      # actions (streamed)
                resident(w1_b), resident(b1),                # fc1     (resident)
                resident(w2s_b), resident(w2a_b), resident(b2),   # fc2
                resident(w3), resident(b3),                  # fc3
            ],
            out_specs=out_spec,
            compiler_params=pltpu.CompilerParams(
                dimension_semantics=dim_semantics,
                vmem_limit_bytes=48 << 20),                  # < physical on all gens
            cost_estimate=cost,
        )(s, a, w1_b, b1, w2s_b, w2a_b, b2, w3, b3)

    try:
        out = launch(_batch_axis_semantics(grid[0]), 3)
    except Exception:
        # Conservative fallback (identical math) if CORE_PARALLEL or
        # pipeline_mode=pl.Buffered is unavailable on this chip / jax build.
        out = launch(("arbitrary",), None)

    return out[0, :B].reshape(B, 1)


def init_params(key, input_size, action_size, hidden_units):
    """Deterministic init mirroring the PyTorch module's reset_parameters().

    lecunishUniformInitializer uses weight.size()[0] == out_features for
    nn.Linear; that quirk is reproduced.  Biases keep PyTorch's default Linear
    init U(-1/sqrt(fan_in), 1/sqrt(fan_in)).  Weights are returned in the
    kernel's transposed-compute layout: W1 (h1, in); W2 split column-wise into
    (h2, h1) and (h2, action); W3 as an (h2, 1) column; biases as columns.
    """
    h1, h2 = hidden_units
    k = jax.random.split(key, 6)

    def u(kk, shape, lim):
        return jax.random.uniform(kk, shape, jnp.float32, -lim, lim)

    w1 = u(k[0], (h1, input_size), np.sqrt(1.0 / h1))
    b1 = u(k[1], (h1, 1), 1.0 / np.sqrt(input_size))
    w2 = u(k[2], (h2, h1 + action_size), np.sqrt(1.0 / h2))
    b2 = u(k[3], (h2, 1), 1.0 / np.sqrt(h1 + action_size))
    w3 = u(k[4], (1, h2), 0.003)
    b3 = u(k[5], (1, 1), 1.0 / np.sqrt(h2))

    w2s = w2[:, :h1]      # columns multiplying the fc1 hidden activations
    w2a = w2[:, h1:]      # columns multiplying the actions
    return (w1, b1, w2s, w2a, b2, w3.T, b3)


def critic_reference(states, actions, params):
    """Pure-JAX f32 reference with the same parameter layout."""
    w1, b1, w2s, w2a, b2, w3, b3 = params
    x = jnp.maximum(states @ w1.T + b1.T, 0.0)
    x = jnp.maximum(x @ w2s.T + actions @ w2a.T + b2.T, 0.0)
    return x @ w3 + b3


if __name__ == "__main__":
    key = jax.random.PRNGKey(0)
    batch, input_size, action_size = 256, 32, 8
    hidden_units = [64, 32]

    k_p, k_s, k_a = jax.random.split(key, 3)
    params = init_params(k_p, input_size, action_size, hidden_units)
    states = jax.random.normal(k_s, (batch, input_size), jnp.float32)
    actions = jax.random.normal(k_a, (batch, action_size), jnp.float32)

    ref = critic_reference(states, actions, params)

    # 1) Small tile -> grid=(2,): exercises the streamed/pipelined batch axis.
    out = jax.block_until_ready(
        critic_forward(states, actions, params, tile_b=128))
    assert out.shape == (batch, 1), out.shape
    # bf16 matmul operands (f32 accumulation) -> relaxed tolerance vs f32 ref.
    np.testing.assert_allclose(np.asarray(out), np.asarray(ref),
                               rtol=2e-2, atol=2e-2)

    # 2) Default (large, clamped) tile + batch not a multiple of 128:
    #    exercises the pad-to-128 path and the tile_b clamp.
    b_small = 200
    out2 = jax.block_until_ready(
        critic_forward(states[:b_small], actions[:b_small], params))
    assert out2.shape == (b_small, 1), out2.shape
    np.testing.assert_allclose(np.asarray(out2), np.asarray(ref[:b_small]),
                               rtol=2e-2, atol=2e-2)

    print("KERNEL_OK")
</pallas_src>

<mosaic_0001>
module attributes {stable_mosaic.version = 11 : i64} {
  func.func @critic_kernel(%arg0: i32, %arg1: memref<128x32xf32, #tpu.memory_space<vmem>>, %arg2: memref<128x8xf32, #tpu.memory_space<vmem>>, %arg3: memref<64x32xbf16, #tpu.memory_space<vmem>>, %arg4: memref<64x1xf32, #tpu.memory_space<vmem>>, %arg5: memref<32x64xbf16, #tpu.memory_space<vmem>>, %arg6: memref<32x8xbf16, #tpu.memory_space<vmem>>, %arg7: memref<32x1xf32, #tpu.memory_space<vmem>>, %arg8: memref<32x1xf32, #tpu.memory_space<vmem>>, %arg9: memref<1x1xf32, #tpu.memory_space<vmem>>, %arg10: memref<1x128xf32, #tpu.memory_space<vmem>>) attributes {dimension_semantics = [#tpu.dimension_semantics<arbitrary>], iteration_bounds = array<i64: 2>, scalar_prefetch = 0 : i64, scratch_operands = 0 : i64, tpu.core_type = #tpu.core_type<tc>, window_params = [{transform_indices = @transform_0, window_bounds = array<i64: 128, 32>}, {transform_indices = @transform_1, window_bounds = array<i64: 128, 8>}, {pipeline_mode = #tpu.pipeline_mode<synchronous>, transform_indices = @transform_2, window_bounds = array<i64: 64, 32>}, {pipeline_mode = #tpu.pipeline_mode<synchronous>, transform_indices = @transform_3, window_bounds = array<i64: 64, 1>}, {pipeline_mode = #tpu.pipeline_mode<synchronous>, transform_indices = @transform_4, window_bounds = array<i64: 32, 64>}, {pipeline_mode = #tpu.pipeline_mode<synchronous>, transform_indices = @transform_5, window_bounds = array<i64: 32, 8>}, {pipeline_mode = #tpu.pipeline_mode<synchronous>, transform_indices = @transform_6, window_bounds = array<i64: 32, 1>}, {pipeline_mode = #tpu.pipeline_mode<synchronous>, transform_indices = @transform_7, window_bounds = array<i64: 32, 1>}, {pipeline_mode = #tpu.pipeline_mode<synchronous>, transform_indices = @transform_8, window_bounds = array<i64: 1, 1>}, {transform_indices = @transform_9, window_bounds = array<i64: 1, 128>}]} {
    %c0 = arith.constant 0 : index
    %c0_0 = arith.constant 0 : index
    %0 = vector.load %arg1[%c0, %c0_0] : memref<128x32xf32, #tpu.memory_space<vmem>>, vector<128x32xf32>
    %1 = arith.truncf %0 : vector<128x32xf32> to vector<128x32xbf16>
    %c0_1 = arith.constant 0 : index
    %c0_2 = arith.constant 0 : index
    %2 = vector.load %arg2[%c0_1, %c0_2] : memref<128x8xf32, #tpu.memory_space<vmem>>, vector<128x8xf32>
    %3 = arith.truncf %2 : vector<128x8xf32> to vector<128x8xbf16>
    %c0_3 = arith.constant 0 : index
    %c0_4 = arith.constant 0 : index
    %4 = vector.load %arg3[%c0_3, %c0_4] : memref<64x32xbf16, #tpu.memory_space<vmem>>, vector<64x32xbf16>
    %cst = arith.constant dense<0.000000e+00> : vector<64x128xf32>
    %5 = tpu.matmul %4, %1, %cst {dimension_numbers = #tpu.dot_dimension_numbers<[1], [1], [0], [0], [0, 0, 1, 0], [], []>} : vector<64x32xbf16>, vector<128x32xbf16>, vector<64x128xf32> -> vector<64x128xf32>
    %c0_5 = arith.constant 0 : index
    %c0_6 = arith.constant 0 : index
    %6 = vector.load %arg4[%c0_5, %c0_6] : memref<64x1xf32, #tpu.memory_space<vmem>>, vector<64x1xf32>
    %7 = vector.broadcast %6 : vector<64x1xf32> to vector<64x128xf32>
    %8 = arith.addf %5, %7 : vector<64x128xf32>
    %cst_7 = arith.constant 0.000000e+00 : f32
    %9 = vector.broadcast %cst_7 : f32 to vector<64x128xf32>
    %10 = arith.maximumf %8, %9 : vector<64x128xf32>
    %11 = arith.truncf %10 : vector<64x128xf32> to vector<64x128xbf16>
    %c0_8 = arith.constant 0 : index
    %c0_9 = arith.constant 0 : index
    %12 = vector.load %arg5[%c0_8, %c0_9] : memref<32x64xbf16, #tpu.memory_space<vmem>>, vector<32x64xbf16>
    %cst_10 = arith.constant dense<0.000000e+00> : vector<32x128xf32>
    %13 = tpu.matmul %12, %11, %cst_10 {dimension_numbers = #tpu.dot_dimension_numbers<[1], [0], [0], [1], [0, 0, 1, 1], [], []>} : vector<32x64xbf16>, vector<64x128xbf16>, vector<32x128xf32> -> vector<32x128xf32>
    %c0_11 = arith.constant 0 : index
    %c0_12 = arith.constant 0 : index
    %14 = vector.load %arg6[%c0_11, %c0_12] : memref<32x8xbf16, #tpu.memory_space<vmem>>, vector<32x8xbf16>
    %cst_13 = arith.constant dense<0.000000e+00> : vector<32x128xf32>
    %15 = tpu.matmul %14, %3, %cst_13 {dimension_numbers = #tpu.dot_dimension_numbers<[1], [1], [0], [0], [0, 0, 1, 0], [], []>} : vector<32x8xbf16>, vector<128x8xbf16>, vector<32x128xf32> -> vector<32x128xf32>
    %16 = arith.addf %13, %15 : vector<32x128xf32>
    %c0_14 = arith.constant 0 : index
    %c0_15 = arith.constant 0 : index
    %17 = vector.load %arg7[%c0_14, %c0_15] : memref<32x1xf32, #tpu.memory_space<vmem>>, vector<32x1xf32>
    %18 = vector.broadcast %17 : vector<32x1xf32> to vector<32x128xf32>
    %19 = arith.addf %16, %18 : vector<32x128xf32>
    %cst_16 = arith.constant 0.000000e+00 : f32
    %20 = vector.broadcast %cst_16 : f32 to vector<32x128xf32>
    %21 = arith.maximumf %19, %20 : vector<32x128xf32>
    %c0_17 = arith.constant 0 : index
    %c0_18 = arith.constant 0 : index
    %22 = vector.load %arg8[%c0_17, %c0_18] : memref<32x1xf32, #tpu.memory_space<vmem>>, vector<32x1xf32>
    %23 = vector.broadcast %22 : vector<32x1xf32> to vector<32x128xf32>
    %24 = arith.mulf %21, %23 : vector<32x128xf32>
    %cst_19 = arith.constant dense<0.000000e+00> : vector<128xf32>
    %25 = vector.multi_reduction <add>, %24, %cst_19 [0] : vector<32x128xf32> to vector<128xf32>
    %26 = vector.shape_cast %25 : vector<128xf32> to vector<1x128xf32>
    %c0_20 = arith.constant 0 : index
    %c0_21 = arith.constant 0 : index
    %27 = vector.load %arg9[%c0_20, %c0_21] : memref<1x1xf32, #tpu.memory_space<vmem>>, vector<1x1xf32>
    %28 = vector.broadcast %27 : vector<1x1xf32> to vector<1x128xf32>
    %29 = arith.addf %26, %28 : vector<1x128xf32>
    %c0_22 = arith.constant 0 : index
    %c0_23 = arith.constant 0 : index
    %30 = vector.load %arg10[%c0_22, %c0_23] : memref<1x128xf32, #tpu.memory_space<vmem>>, vector<1x128xf32>
    tpu.vector_store %arg10[%c0_22, %c0_23], %29 {strides = array<i32>} : memref<1x128xf32, #tpu.memory_space<vmem>>, vector<1x128xf32>,
    return
  }
  func.func @transform_0(%arg0: i32) -> (i32, i32) {
    %c0_i32 = arith.constant 0 : i32
    %c0_i32_0 = arith.constant 0 : i32
    return %arg0, %c0_i32 : i32, i32
  }
  func.func @transform_1(%arg0: i32) -> (i32, i32) {
    %c0_i32 = arith.constant 0 : i32
    %c0_i32_0 = arith.constant 0 : i32
    return %arg0, %c0_i32 : i32, i32
  }
  func.func @transform_2(%arg0: i32) -> (i32, i32) {
    %c0_i32 = arith.constant 0 : i32
    %c0_i32_0 = arith.constant 0 : i32
    %c0_i32_1 = arith.constant 0 : i32
    return %c0_i32, %c0_i32_0 : i32, i32
  }
  func.func @transform_3(%arg0: i32) -> (i32, i32) {
    %c0_i32 = arith.constant 0 : i32
    %c0_i32_0 = arith.constant 0 : i32
    %c0_i32_1 = arith.constant 0 : i32
    return %c0_i32, %c0_i32_0 : i32, i32
  }
  func.func @transform_4(%arg0: i32) -> (i32, i32) {
    %c0_i32 = arith.constant 0 : i32
    %c0_i32_0 = arith.constant 0 : i32
    %c0_i32_1 = arith.constant 0 : i32
    return %c0_i32, %c0_i32_0 : i32, i32
  }
  func.func @transform_5(%arg0: i32) -> (i32, i32) {
    %c0_i32 = arith.constant 0 : i32
    %c0_i32_0 = arith.constant 0 : i32
    %c0_i32_1 = arith.constant 0 : i32
    return %c0_i32, %c0_i32_0 : i32, i32
  }
  func.func @transform_6(%arg0: i32) -> (i32, i32) {
    %c0_i32 = arith.constant 0 : i32
    %c0_i32_0 = arith.constant 0 : i32
    %c0_i32_1 = arith.constant 0 : i32
    return %c0_i32, %c0_i32_0 : i32, i32
  }
  func.func @transform_7(%arg0: i32) -> (i32, i32) {
    %c0_i32 = arith.constant 0 : i32
    %c0_i32_0 = arith.constant 0 : i32
    %c0_i32_1 = arith.constant 0 : i32
    return %c0_i32, %c0_i32_0 : i32, i32
  }
  func.func @transform_8(%arg0: i32) -> (i32, i32) {
    %c0_i32 = arith.constant 0 : i32
    %c0_i32_0 = arith.constant 0 : i32
    %c0_i32_1 = arith.constant 0 : i32
    return %c0_i32, %c0_i32_0 : i32, i32
  }
  func.func @transform_9(%arg0: i32) -> (i32, i32) {
    %c0_i32 = arith.constant 0 : i32
    %c0_i32_0 = arith.constant 0 : i32
    return %c0_i32, %arg0 : i32, i32
  }
}

</mosaic_0001>

<llo_original>
// kernel: tpu_custom_call.1
$region0: #{tpu_custom_call.1}
  #allocation0 [shape = 'u32[]', space=smem, size = 0x4, offset = 0x4, fixed_abs, tag = 'smem constant byte address 0x4 - core index']
  #allocation1 [shape = 'u32[144,128]{1,0:T(1,128)}', space=vmem, size = 0x12000, scoped, tag = 'internal scratch']
  #allocation2 [shape = 'f32[1,1]{1,0:T(1,128)S(1)}', space=vmem, size = 0x200, scoped, tag = 'scoped memory for tpu_custom_call.1']
  %s0 = inlined_call_operand.vmem [shape: f32[256,32], index: 0, kind: input, shape index: {}]
  %s1 = inlined_call_operand.vmem [shape: f32[256,8], index: 1, kind: input, shape index: {}]
  %s2 = inlined_call_operand.vmem [shape: bf16[64,32], index: 2, kind: input, shape index: {}]
  %s3 = inlined_call_operand.vmem [shape: f32[64,1], index: 3, kind: input, shape index: {}]
  %s4 = inlined_call_operand.vmem [shape: bf16[32,64], index: 4, kind: input, shape index: {}]
  %s5 = inlined_call_operand.vmem [shape: bf16[32,8], index: 5, kind: input, shape index: {}]
  %s6 = inlined_call_operand.vmem [shape: f32[32,1], index: 6, kind: input, shape index: {}]
  %s7 = inlined_call_operand.vmem [shape: f32[32,1], index: 7, kind: input, shape index: {}]
  %s8 = inlined_call_operand.<no memory space> [shape: f32[1,1], index: 8, kind: input, shape index: {}]
  %s9 = inlined_call_operand.hbm [shape: f32[1,256], index: 9, kind: output, shape index: {}]
  %s10 = sld [smem:[#allocation0]]
  $region69: #{tpu_custom_call.1} parent=0
    _
  %s12 = ssub.s32 1, %s10
  %s13 = scalar_select 0, %s12, %s10
  %v14 = vstv %s8
  %15 = vst [vmem:[#allocation2] sm:$0x1] %v14
  $region1: #{tpu_custom_call.1} parent=0
    #allocation3 [shape = 'u8[1024]{0}', space=vmem, size = 0x400, scoped, tag = 'output window, operand 0']
    #allocation4 [shape = 's32[2]{0}', space=sflag, size = 0x8, scoped, tag = 'scoped memory for tpu_custom_call.1']
    %16 = vsyncpa [#allocation4], 0
    %s17 = scalar_lea.sflag [#allocation4], 1
    %18 = vsyncpa %s17, 0
    loop: start=0, step=1, limit=4
    $region2: #{tpu_custom_call.1} parent=1 // loop_pre_header
      _
    $region3: #{tpu_custom_call.1} parent=1 // loop_header
      %s20 = sphi 0, %s24
      %p21 = scmp.ge.s32.totalorder %s20, 4
      %s30 = sphi 0, %s32
      %s33 = sphi 0, %s30
      %s34 = sphi 0, %s33
      %s50 = sphi 0, %s34
      %s56 = sphi 0, %s58
      %s59 = sphi 0, %s56
      %s60 = sphi 0, %s59
      %s76 = sphi 0, %s60
      %s80 = sphi 0, %s80
      %s82 = sphi 0, %s80
      %s83 = sphi 0, %s82
      %s97 = sphi 0, %s83
      %s101 = sphi 0, %s101
      %s103 = sphi 0, %s101
      %s104 = sphi 0, %s103
      %s118 = sphi 0, %s104
      %s122 = sphi 0, %s122
      %s124 = sphi 0, %s122
      %s125 = sphi 0, %s124
      %s139 = sphi 0, %s125
      %s143 = sphi 0, %s143
      %s145 = sphi 0, %s143
      %s146 = sphi 0, %s145
      %s160 = sphi 0, %s146
      %s164 = sphi 0, %s164
      %s166 = sphi 0, %s164
      %s167 = sphi 0, %s166
      %s181 = sphi 0, %s167
      %s185 = sphi 0, %s185
      %s187 = sphi 0, %s185
      %s188 = sphi 0, %s187
      %s202 = sphi 0, %s188
      %s206 = sphi 0, %s206
      %s208 = sphi 0, %s206
      %s209 = sphi 0, %s208
      %s223 = sphi 0, %s209
      %s229 = sphi 0, %s231
      %s232 = sphi 0, %s229
      %s233 = sphi 0, %s232
      %s249 = sphi 0, %s233
    $region4: #{tpu_custom_call.1} parent=1 // loop_header_branch
      %23 = sbr.rel (%p21) target = $region8
    $region5: #{tpu_custom_call.1} parent=1 // loop_body
      %s25 = ssub.s32 %s20, 1
      %s26 = ssub.s32 %s20, 2
      %s27 = sadd.s32 %s20, 1
      %s28 = ssub.s32 %s20, %s27
      %p29 = scmp.eq.s32.totalorder %s28, 0
      %s31 = sadd.s32 %s30, 1
      %s32 = scalar_select %p29, %s30, %s31
      %p35 = pneg %p29
      %p36 = scmp.eq.s32.totalorder %s20, 1
      %p37 = por %p35, %p36
      %p38 = scmp.ne.s32.totalorder %s30, %s33
      %p39 = scmp.eq.s32.totalorder %s20, 0
      %p40 = por %p38, %p39
      %p41 = scmp.ne.s32.totalorder %s30, %s33
      %p42 = scmp.eq.s32.totalorder %s25, 1
      %p43 = por %p41, %p42
      %p44 = scmp.ne.s32.totalorder %s33, %s34
      %p45 = scmp.eq.s32.totalorder %s25, 0
      %p46 = por %p44, %p45
      %p47 = scmp.ne.s32.totalorder %s33, %s34
      %p48 = scmp.eq.s32.totalorder %s26, 1
      %p49 = por %p47, %p48
      %p51 = scmp.ne.s32.totalorder %s34, %s50
      %p52 = scmp.eq.s32.totalorder %s26, 0
      %p53 = por %p51, %p52
      %s54 = ssub.s32 %s20, %s27
      %p55 = scmp.eq.s32.totalorder %s54, 0
      %s57 = sadd.s32 %s56, 1
      %s58 = scalar_select %p55, %s56, %s57
      %p61 = pneg %p55
      %p62 = scmp.eq.s32.totalorder %s20, 1
      %p63 = por %p61, %p62
      %p64 = scmp.ne.s32.totalorder %s56, %s59
      %p65 = scmp.eq.s32.totalorder %s20, 0
      %p66 = por %p64, %p65
      %p67 = scmp.ne.s32.totalorder %s56, %s59
      %p68 = scmp.eq.s32.totalorder %s25, 1
      %p69 = por %p67, %p68
      %p70 = scmp.ne.s32.totalorder %s59, %s60
      %p71 = scmp.eq.s32.totalorder %s25, 0
      %p72 = por %p70, %p71
      %p73 = scmp.ne.s32.totalorder %s59, %s60
      %p74 = scmp.eq.s32.totalorder %s26, 1
      %p75 = por %p73, %p74
      %p77 = scmp.ne.s32.totalorder %s60, %s76
      %p78 = scmp.eq.s32.totalorder %s26, 0
      %p79 = por %p77, %p78
      %s81 = sadd.s32 %s80, 1
      %p84 = scmp.eq.s32.totalorder %s20, 1
      %p85 = scmp.ne.s32.totalorder %s80, %s82
      %p86 = scmp.eq.s32.totalorder %s20, 0
      %p87 = por %p85, %p86
      %p88 = scmp.ne.s32.totalorder %s80, %s82
      %p89 = scmp.eq.s32.totalorder %s25, 1
      %p90 = por %p88, %p89
      %p91 = scmp.ne.s32.totalorder %s82, %s83
      %p92 = scmp.eq.s32.totalorder %s25, 0
      %p93 = por %p91, %p92
      %p94 = scmp.ne.s32.totalorder %s82, %s83
      %p95 = scmp.eq.s32.totalorder %s26, 1
      %p96 = por %p94, %p95
      %p98 = scmp.ne.s32.totalorder %s83, %s97
      %p99 = scmp.eq.s32.totalorder %s26, 0
      %p100 = por %p98, %p99
      %s102 = sadd.s32 %s101, 1
      %p105 = scmp.eq.s32.totalorder %s20, 1
      %p106 = scmp.ne.s32.totalorder %s101, %s103
      %p107 = scmp.eq.s32.totalorder %s20, 0
      %p108 = por %p106, %p107
      %p109 = scmp.ne.s32.totalorder %s101, %s103
      %p110 = scmp.eq.s32.totalorder %s25, 1
      %p111 = por %p109, %p110
      %p112 = scmp.ne.s32.totalorder %s103, %s104
      %p113 = scmp.eq.s32.totalorder %s25, 0
      %p114 = por %p112, %p113
      %p115 = scmp.ne.s32.totalorder %s103, %s104
      %p116 = scmp.eq.s32.totalorder %s26, 1
      %p117 = por %p115, %p116
      %p119 = scmp.ne.s32.totalorder %s104, %s118
      %p120 = scmp.eq.s32.totalorder %s26, 0
      %p121 = por %p119, %p120
      %s123 = sadd.s32 %s122, 1
      %p126 = scmp.eq.s32.totalorder %s20, 1
      %p127 = scmp.ne.s32.totalorder %s122, %s124
      %p128 = scmp.eq.s32.totalorder %s20, 0
      %p129 = por %p127, %p128
      %p130 = scmp.ne.s32.totalorder %s122, %s124
      %p131 = scmp.eq.s32.totalorder %s25, 1
      %p132 = por %p130, %p131
      %p133 = scmp.ne.s32.totalorder %s124, %s125
      %p134 = scmp.eq.s32.totalorder %s25, 0
      %p135 = por %p133, %p134
      %p136 = scmp.ne.s32.totalorder %s124, %s125
      %p137 = scmp.eq.s32.totalorder %s26, 1
      %p138 = por %p136, %p137
      %p140 = scmp.ne.s32.totalorder %s125, %s139
      %p141 = scmp.eq.s32.totalorder %s26, 0
      %p142 = por %p140, %p141
      %s144 = sadd.s32 %s143, 1
      %p147 = scmp.eq.s32.totalorder %s20, 1
      %p148 = scmp.ne.s32.totalorder %s143, %s145
      %p149 = scmp.eq.s32.totalorder %s20, 0
      %p150 = por %p148, %p149
      %p151 = scmp.ne.s32.totalorder %s143, %s145
      %p152 = scmp.eq.s32.totalorder %s25, 1
      %p153 = por %p151, %p152
      %p154 = scmp.ne.s32.totalorder %s145, %s146
      %p155 = scmp.eq.s32.totalorder %s25, 0
      %p156 = por %p154, %p155
      %p157 = scmp.ne.s32.totalorder %s145, %s146
      %p158 = scmp.eq.s32.totalorder %s26, 1
      %p159 = por %p157, %p158
      %p161 = scmp.ne.s32.totalorder %s146, %s160
      %p162 = scmp.eq.s32.totalorder %s26, 0
      %p163 = por %p161, %p162
      %s165 = sadd.s32 %s164, 1
      %p168 = scmp.eq.s32.totalorder %s20, 1
      %p169 = scmp.ne.s32.totalorder %s164, %s166
      %p170 = scmp.eq.s32.totalorder %s20, 0
      %p171 = por %p169, %p170
      %p172 = scmp.ne.s32.totalorder %s164, %s166
      %p173 = scmp.eq.s32.totalorder %s25, 1
      %p174 = por %p172, %p173
      %p175 = scmp.ne.s32.totalorder %s166, %s167
      %p176 = scmp.eq.s32.totalorder %s25, 0
      %p177 = por %p175, %p176
      %p178 = scmp.ne.s32.totalorder %s166, %s167
      %p179 = scmp.eq.s32.totalorder %s26, 1
      %p180 = por %p178, %p179
      %p182 = scmp.ne.s32.totalorder %s167, %s181
      %p183 = scmp.eq.s32.totalorder %s26, 0
      %p184 = por %p182, %p183
      %s186 = sadd.s32 %s185, 1
      %p189 = scmp.eq.s32.totalorder %s20, 1
      %p190 = scmp.ne.s32.totalorder %s185, %s187
      %p191 = scmp.eq.s32.totalorder %s20, 0
      %p192 = por %p190, %p191
      %p193 = scmp.ne.s32.totalorder %s185, %s187
      %p194 = scmp.eq.s32.totalorder %s25, 1
      %p195 = por %p193, %p194
      %p196 = scmp.ne.s32.totalorder %s187, %s188
      %p197 = scmp.eq.s32.totalorder %s25, 0
      %p198 = por %p196, %p197
      %p199 = scmp.ne.s32.totalorder %s187, %s188
      %p200 = scmp.eq.s32.totalorder %s26, 1
      %p201 = por %p199, %p200
      %p203 = scmp.ne.s32.totalorder %s188, %s202
      %p204 = scmp.eq.s32.totalorder %s26, 0
      %p205 = por %p203, %p204
      %s207 = sadd.s32 %s206, 1
      %p210 = scmp.eq.s32.totalorder %s20, 1
      %p211 = scmp.ne.s32.totalorder %s206, %s208
      %p212 = scmp.eq.s32.totalorder %s20, 0
      %p213 = por %p211, %p212
      %p214 = scmp.ne.s32.totalorder %s206, %s208
      %p215 = scmp.eq.s32.totalorder %s25, 1
      %p216 = por %p214, %p215
      %p217 = scmp.ne.s32.totalorder %s208, %s209
      %p218 = scmp.eq.s32.totalorder %s25, 0
      %p219 = por %p217, %p218
      %p220 = scmp.ne.s32.totalorder %s208, %s209
      %p221 = scmp.eq.s32.totalorder %s26, 1
      %p222 = por %p220, %p221
      %p224 = scmp.ne.s32.totalorder %s209, %s223
      %p225 = scmp.eq.s32.totalorder %s26, 0
      %p226 = por %p224, %p225
      %s227 = ssub.s32 %s20, %s27
      %p228 = scmp.eq.s32.totalorder %s227, 0
      %s230 = sadd.s32 %s229, 1
      %s231 = scalar_select %p228, %s229, %s230
      %p234 = pneg %p228
      %p235 = scmp.eq.s32.totalorder %s20, 1
      %p236 = por %p234, %p235
      %p237 = scmp.ne.s32.totalorder %s229, %s232
      %p238 = scmp.eq.s32.totalorder %s20, 0
      %p239 = por %p237, %p238
      %p240 = scmp.ne.s32.totalorder %s229, %s232
      %p241 = scmp.eq.s32.totalorder %s25, 1
      %p242 = por %p240, %p241
      %p243 = scmp.ne.s32.totalorder %s232, %s233
      %p244 = scmp.eq.s32.totalorder %s25, 0
      %p245 = por %p243, %p244
      %p246 = scmp.ne.s32.totalorder %s232, %s233
      %p247 = scmp.eq.s32.totalorder %s26, 1
      %p248 = por %p246, %p247
      %p250 = scmp.ne.s32.totalorder %s233, %s249
      %p251 = scmp.eq.s32.totalorder %s26, 0
      %p252 = por %p250, %p251
      %p253 = scmp.le.s32.totalorder 1, %s20
      %p254 = scmp.lt.s32.totalorder %s20, 3
      %p255 = pnand %p253, %p254
      %p256 = pneg %p255
      // Predicated region
      $region9: #{tpu_custom_call.1} parent=5 // pred_check
        _
      $region10: #{tpu_custom_call.1} parent=5 // pred_check_branch
        %258 = sbr.rel (%p255) target = $region12
      $region11: #{tpu_custom_call.1} parent=5 // pred_region
        %s259 = ssub.s32 %s20, 1
        // Predicated region
        $region13: #{tpu_custom_call.1} parent=11 // pred_check
          %p260 = pneg %p93
        $region14: #{tpu_custom_call.1} parent=11 // pred_check_branch
          %262 = sbr.rel (%p260) target = $region16
        $region15: #{tpu_custom_call.1} parent=11 // pred_region
          _
        $region16: #{tpu_custom_call.1} parent=11 // pred_fallthru
          _
        // Predicated region
        $region17: #{tpu_custom_call.1} parent=11 // pred_check
          %p263 = pneg %p114
        $region18: #{tpu_custom_call.1} parent=11 // pred_check_branch
          %265 = sbr.rel (%p263) target = $region20
        $region19: #{tpu_custom_call.1} parent=11 // pred_region
          _
        $region20: #{tpu_custom_call.1} parent=11 // pred_fallthru
          _
        // Predicated region
        $region21: #{tpu_custom_call.1} parent=11 // pred_check
          %p266 = pneg %p135
        $region22: #{tpu_custom_call.1} parent=11 // pred_check_branch
          %268 = sbr.rel (%p266) target = $region24
        $region23: #{tpu_custom_call.1} parent=11 // pred_region
          _
        $region24: #{tpu_custom_call.1} parent=11 // pred_fallthru
          _
        // Predicated region
        $region25: #{tpu_custom_call.1} parent=11 // pred_check
          %p269 = pneg %p156
        $region26: #{tpu_custom_call.1} parent=11 // pred_check_branch
          %271 = sbr.rel (%p269) target = $region28
        $region27: #{tpu_custom_call.1} parent=11 // pred_region
          _
        $region28: #{tpu_custom_call.1} parent=11 // pred_fallthru
          _
        // Predicated region
        $region29: #{tpu_custom_call.1} parent=11 // pred_check
          %p272 = pneg %p177
        $region30: #{tpu_custom_call.1} parent=11 // pred_check_branch
          %274 = sbr.rel (%p272) target = $region32
        $region31: #{tpu_custom_call.1} parent=11 // pred_region
          _
        $region32: #{tpu_custom_call.1} parent=11 // pred_fallthru
          _
        // Predicated region
        $region33: #{tpu_custom_call.1} parent=11 // pred_check
          %p275 = pneg %p198
        $region34: #{tpu_custom_call.1} parent=11 // pred_check_branch
          %277 = sbr.rel (%p275) target = $region36
        $region35: #{tpu_custom_call.1} parent=11 // pred_region
          _
        $region36: #{tpu_custom_call.1} parent=11 // pred_fallthru
          _
        // Predicated region
        $region37: #{tpu_custom_call.1} parent=11 // pred_check
          %p278 = pneg %p219
        $region38: #{tpu_custom_call.1} parent=11 // pred_check_branch
          %280 = sbr.rel (%p278) target = $region40
        $region39: #{tpu_custom_call.1} parent=11 // pred_region
          _
        $region40: #{tpu_custom_call.1} parent=11 // pred_fallthru
          _
      $region12: #{tpu_custom_call.1} parent=5 // pred_fallthru
        _
      %p281 = scmp.lt.s32.totalorder %s20, 2
      // Predicated region
      $region41: #{tpu_custom_call.1} parent=5 // pred_check
        %p282 = pneg %p281
      $region42: #{tpu_custom_call.1} parent=5 // pred_check_branch
        %284 = sbr.rel (%p282) target = $region44
      $region43: #{tpu_custom_call.1} parent=5 // pred_region
        // Predicated region
        $region45: #{tpu_custom_call.1} parent=43 // pred_check
          %p285 = pneg %p40
        $region46: #{tpu_custom_call.1} parent=43 // pred_check_branch
          %287 = sbr.rel (%p285) target = $region48
        $region47: #{tpu_custom_call.1} parent=43 // pred_region
          %s288 = smul.u32 16, %s20
          %p289 = scmp.lt.s32.totalorder %s288, 31
          %s290 = scalar_select %p289, %s288, 31
          %s291 = smul.addr %s290, 8
          %s292 = scalar_lea.vmem %s0, %s291
          %s293 = smul.u32 16, %s20
        $region48: #{tpu_custom_call.1} parent=43 // pred_fallthru
          _
        // Predicated region
        $region49: #{tpu_custom_call.1} parent=43 // pred_check
          %p294 = pneg %p66
        $region50: #{tpu_custom_call.1} parent=43 // pred_check_branch
          %296 = sbr.rel (%p294) target = $region52
        $region51: #{tpu_custom_call.1} parent=43 // pred_region
          %s297 = smul.u32 16, %s20
          %p298 = scmp.lt.s32.totalorder %s297, 31
          %s299 = scalar_select %p298, %s297, 31
          %s300 = smul.addr %s299, 8
          %s301 = scalar_lea.vmem %s1, %s300
          %s302 = smul.u32 16, %s20
        $region52: #{tpu_custom_call.1} parent=43 // pred_fallthru
          _
      $region44: #{tpu_custom_call.1} parent=5 // pred_fallthru
        _
      %p303 = scmp.le.s32.totalorder 1, %s20
      %p304 = scmp.lt.s32.totalorder %s20, 3
      %p305 = pnand %p303, %p304
      %p306 = pneg %p305
      // Predicated region
      $region53: #{tpu_custom_call.1} parent=5 // pred_check
        _
      $region54: #{tpu_custom_call.1} parent=5 // pred_check_branch
        %308 = sbr.rel (%p305) target = $region56
      $region55: #{tpu_custom_call.1} parent=5 // pred_region
        %s309 = ssub.s32 %s20, 1
        %s310 = smul.u32 16, %s25
        %p311 = scmp.lt.s32.totalorder %s310, 31
        %s312 = scalar_select %p311, %s310, 31
        %s313 = smul.addr %s312, 8
        %s314 = scalar_lea.vmem %s0, %s313
        %p315 = pneg %p46
        %p316 = pneg %p43
        %s317 = smul.u32 16, %s25
        %p318 = scmp.lt.s32.totalorder %s317, 31
        %s319 = scalar_select %p318, %s317, 31
        %s320 = smul.addr %s319, 8
        %s321 = scalar_lea.vmem %s1, %s320
        %p322 = pneg %p72
        %p323 = pneg %p69
        %p324 = pneg %p93
        %p325 = pneg %p90
        %p326 = pneg %p114
        %p327 = pneg %p111
        %p328 = pneg %p135
        %p329 = pneg %p132
        %p330 = pneg %p156
        %p331 = pneg %p153
        %p332 = pneg %p177
        %p333 = pneg %p174
        %p334 = pneg %p198
        %p335 = pneg %p195
        %p336 = pneg %p219
        %p337 = pneg %p216
        %p338 = pneg %p245
        %p339 = pneg %p242
        %s340 = sand.u32 %s232, 1
        %s341 = scalar_lea.sflag [#allocation4], %s340
        %s342 = sand.u32 %s232, 1
        %s343 = scalar_lea.vmem [#allocation3], %s342
        %s344 = smul.u32 16, %s25
        %p345 = scmp.lt.s32.totalorder %s344, 31
        %s346 = scalar_select %p345, %s344, 31
        %s347 = smul.addr %s346, 8
        %s348 = scalar_lea.vmem %s0, %s347
        %s349 = smul.u32 16, %s25
        %s350 = smul.u32 16, %s25
        %p351 = scmp.lt.s32.totalorder %s350, 31
        %s352 = scalar_select %p351, %s350, 31
        %s353 = smul.addr %s352, 8
        %s354 = scalar_lea.vmem %s1, %s353
        %s355 = smul.u32 16, %s25
        %v357 = vld [vmem:[%s348] sm:$0xff]
        %v358 = vld [vmem:[%s348 + $0x8] sm:$0xff]
        %v359 = vld [vmem:[%s348 + $0x10] sm:$0xff]
        %v360 = vld [vmem:[%s348 + $0x18] sm:$0xff]
        %v361 = vld [vmem:[%s348 + $0x20] sm:$0xff]
        %v362 = vld [vmem:[%s348 + $0x28] sm:$0xff]
        %v363 = vld [vmem:[%s348 + $0x30] sm:$0xff]
        %v364 = vld [vmem:[%s348 + $0x38] sm:$0xff]
        %v365 = vld [vmem:[%s348 + $0x40] sm:$0xff]
        %v366 = vld [vmem:[%s348 + $0x48] sm:$0xff]
        %v367 = vld [vmem:[%s348 + $0x50] sm:$0xff]
        %v368 = vld [vmem:[%s348 + $0x58] sm:$0xff]
        %v369 = vld [vmem:[%s348 + $0x60] sm:$0xff]
        %v370 = vld [vmem:[%s348 + $0x68] sm:$0xff]
        %v371 = vld [vmem:[%s348 + $0x70] sm:$0xff]
        %v372 = vld [vmem:[%s348 + $0x78] sm:$0xff]
        %v373 = vpack.c.bf16 %v358, %v357
        %v374 = vpack.c.bf16 %v360, %v359
        %v375 = vpack.c.bf16 %v362, %v361
        %v376 = vpack.c.bf16 %v364, %v363
        %v377 = vpack.c.bf16 %v366, %v365
        %v378 = vpack.c.bf16 %v368, %v367
        %v379 = vpack.c.bf16 %v370, %v369
        %v380 = vpack.c.bf16 %v372, %v371
        %v381 = vld [vmem:[%s354] sm:$0xff]
        %v382 = vld [vmem:[%s354 + $0x8] sm:$0xff]
        %v383 = vld [vmem:[%s354 + $0x10] sm:$0xff]
        %v384 = vld [vmem:[%s354 + $0x18] sm:$0xff]
        %v385 = vld [vmem:[%s354 + $0x20] sm:$0xff]
        %v386 = vld [vmem:[%s354 + $0x28] sm:$0xff]
        %v387 = vld [vmem:[%s354 + $0x30] sm:$0xff]
        %v388 = vld [vmem:[%s354 + $0x38] sm:$0xff]
        %v389 = vld [vmem:[%s354 + $0x40] sm:$0xff]
        %v390 = vld [vmem:[%s354 + $0x48] sm:$0xff]
        %v391 = vld [vmem:[%s354 + $0x50] sm:$0xff]
        %v392 = vld [vmem:[%s354 + $0x58] sm:$0xff]
        %v393 = vld [vmem:[%s354 + $0x60] sm:$0xff]
        %v394 = vld [vmem:[%s354 + $0x68] sm:$0xff]
        %v395 = vld [vmem:[%s354 + $0x70] sm:$0xff]
        %v396 = vld [vmem:[%s354 + $0x78] sm:$0xff]
        %v397 = vpack.c.bf16 %v382, %v381
        %v398 = vpack.c.bf16 %v384, %v383
        %v399 = vpack.c.bf16 %v386, %v385
        %v400 = vpack.c.bf16 %v388, %v387
        %v401 = vpack.c.bf16 %v390, %v389
        %v402 = vpack.c.bf16 %v392, %v391
        %v403 = vpack.c.bf16 %v394, %v393
        %v404 = vpack.c.bf16 %v396, %v395
        %v405 = vld [vmem:[%s2] sm:$0xf]
        %v406 = vld [vmem:[%s2 + $0x4] sm:$0xf]
        %v407 = vld [vmem:[%s2 + $0x8] sm:$0xf]
        %v408 = vld [vmem:[%s2 + $0xc] sm:$0xf]
        %v409 = vld [vmem:[%s2 + $0x10] sm:$0xf]
        %v410 = vld [vmem:[%s2 + $0x14] sm:$0xf]
        %v411 = vld [vmem:[%s2 + $0x18] sm:$0xf]
        %v412 = vld [vmem:[%s2 + $0x1c] sm:$0xf]
        %v413 = vld [vmem:[%s3] sm:$0xff]
        %v414 = vld [vmem:[%s3 + $0x8] sm:$0xff]
        %v415 = vld [vmem:[%s3 + $0x10] sm:$0xff]
        %v416 = vld [vmem:[%s3 + $0x18] sm:$0xff]
        %v417 = vld [vmem:[%s3 + $0x20] sm:$0xff]
        %v418 = vld [vmem:[%s3 + $0x28] sm:$0xff]
        %v419 = vld [vmem:[%s3 + $0x30] sm:$0xff]
        %v420 = vld [vmem:[%s3 + $0x38] sm:$0xff]
        %422 = vset.pattern.permute.xlu0 0
        %423 = vperm.xlu0 %422, %v413
        %v424 = vpop.permute.xlu0 %423
        %427 = vset.pattern.permute.xlu0 0
        %428 = vperm.xlu0 %427, %v414
        %v429 = vpop.permute.xlu0 %428
        %432 = vset.pattern.permute.xlu0 0
        %433 = vperm.xlu0 %432, %v415
        %v434 = vpop.permute.xlu0 %433
        %437 = vset.pattern.permute.xlu0 0
        %438 = vperm.xlu0 %437, %v416
        %v439 = vpop.permute.xlu0 %438
        %442 = vset.pattern.permute.xlu0 0
        %443 = vperm.xlu0 %442, %v417
        %v444 = vpop.permute.xlu0 %443
        %447 = vset.pattern.permute.xlu0 0
        %448 = vperm.xlu0 %447, %v418
        %v449 = vpop.permute.xlu0 %448
        %452 = vset.pattern.permute.xlu0 0
        %453 = vperm.xlu0 %452, %v419
        %v454 = vpop.permute.xlu0 %453
        %457 = vset.pattern.permute.xlu0 0
        %458 = vperm.xlu0 %457, %v420
        %v459 = vpop.permute.xlu0 %458
        %v469 = vunpack.c.l.b16 %v405
        %v470 = vunpack.c.l.b16 %v406
        %v471 = vunpack.c.l.b16 %v407
        %v472 = vunpack.c.l.b16 %v408
        %v473 = vunpack.c.l.b16 %v409
        %v474 = vunpack.c.l.b16 %v410
        %v475 = vunpack.c.l.b16 %v411
        %v476 = vunpack.c.l.b16 %v412
        %v477 = vpack.c.b16 %v470, %v469
        %v478 = vpack.c.b16 %v472, %v471
        %v479 = vpack.c.b16 %v474, %v473
        %v480 = vpack.c.b16 %v476, %v475
        %vm481 = vcmask 261120
        %v483 = vsel %vm481, %v477, 0
        %v486 = vsel %vm481, %v478, 0
        %v489 = vsel %vm481, %v479, 0
        %v492 = vsel %vm481, %v480, 0
        %v495 = vsel %vm481, %v373, 0
        %v498 = vsel %vm481, %v374, 0
        %v501 = vsel %vm481, %v375, 0
        %v504 = vsel %vm481, %v376, 0
        %v507 = vsel %vm481, %v377, 0
        %v510 = vsel %vm481, %v378, 0
        %v513 = vsel %vm481, %v379, 0
        %v516 = vsel %vm481, %v380, 0
        %518 = vmatprep.subr.bf16.mxu0 0
        %519 = vmatpush1.bf16.xpose.msra.mxu0 %v495
        %520 = vmatprep.subr.bf16.mxu0 0
        %521 = vmatpush1.bf16.xpose.msra.mxu0 %v498
        %522 = vmatprep.subr.bf16.mxu0 0
        %523 = vmatpush1.bf16.xpose.msra.mxu0 %v501
        %524 = vmatprep.subr.bf16.mxu0 0
        %525 = vmatpush1.bf16.xpose.msra.mxu0 %v504
        %526 = vmatprep.subr.bf16.mxu0 0
        %527 = vmatpush1.bf16.xpose.msra.mxu0 %v507
        %528 = vmatprep.subr.bf16.mxu0 0
        %529 = vmatpush1.bf16.xpose.msra.mxu0 %v510
        %530 = vmatprep.subr.bf16.mxu0 0
        %531 = vmatpush1.bf16.xpose.msra.mxu0 %v513
        %532 = vmatprep.subr.bf16.mxu0 0
        %533 = vmatpush1.bf16.xpose.msra.mxu0 %v516
        %534 = vmatprep.subr.bf16.mxu0 0
        %535 = vmatpush1.bf16.xpose.msra.mxu0 0
        %536 = vmatprep.subr.bf16.mxu0 0
        %537 = vmatpush1.bf16.xpose.msra.mxu0 0
        %538 = vmatprep.subr.bf16.mxu0 0
        %539 = vmatpush1.bf16.xpose.msra.mxu0 0
        %540 = vmatprep.subr.bf16.mxu0 0
        %541 = vmatpush1.bf16.xpose.msra.mxu0 0
        %542 = vmatprep.subr.bf16.mxu0 0
        %543 = vmatpush1.bf16.xpose.msra.mxu0 0
        %544 = vmatprep.subr.bf16.mxu0 0
        %545 = vmatpush1.bf16.xpose.msra.mxu0 0
        %546 = vmatprep.subr.bf16.mxu0 0
        %547 = vmatpush1.bf16.xpose.msra.mxu0 0
        %548 = vmatprep.subr.bf16.mxu0 0
        %549 = vmatpush1.bf16.xpose.msra.mxu0 0
        %550 = vmatprep.mubr.bf16.mxu0 0
        %551 = vmatmul.mubr.bf16.gmra.mrb[0].mxu0 %v483
        %v552 = vpop.f32.mrb[0].mxu0
        %v553 = vadd.f32 %v424, %v552
        %v554 = vpop.f32.mrb[0].mxu0
        %v555 = vpop.f32.mrb[0].mxu0
        %v556 = vadd.f32 %v429, %v555
        %v557 = vpop.f32.mrb[0].mxu0
        %558 = vmatprep.mubr.bf16.mxu0 0
        %559 = vmatmul.mubr.bf16.gmra.mrb[0].mxu0 %v486
        %v560 = vpop.f32.mrb[0].mxu0
        %v561 = vadd.f32 %v434, %v560
        %v562 = vpop.f32.mrb[0].mxu0
        %v563 = vpop.f32.mrb[0].mxu0
        %v564 = vadd.f32 %v439, %v563
        %v565 = vpop.f32.mrb[0].mxu0
        %566 = vmatprep.mubr.bf16.mxu0 0
        %567 = vmatmul.mubr.bf16.gmra.mrb[0].mxu0 %v489
        %v568 = vpop.f32.mrb[0].mxu0
        %v569 = vadd.f32 %v444, %v568
        %v570 = vpop.f32.mrb[0].mxu0
        %v571 = vpop.f32.mrb[0].mxu0
        %v572 = vadd.f32 %v449, %v571
        %v573 = vpop.f32.mrb[0].mxu0
        %574 = vmatprep.mubr.bf16.mxu0 0
        %575 = vmatmul.mubr.bf16.gmra.mrb[0].mxu0 %v492
        %v576 = vpop.f32.mrb[0].mxu0
        %v577 = vadd.f32 %v454, %v576
        %v578 = vpop.f32.mrb[0].mxu0
        %v579 = vpop.f32.mrb[0].mxu0
        %v580 = vadd.f32 %v459, %v579
        %v581 = vpop.f32.mrb[0].mxu0
        %582 = vdwg.mxu0
        %v583 = vmax.f32 %v553, 0.0
        %v584 = vmax.f32 %v556, 0.0
        %v585 = vmax.f32 %v561, 0.0
        %v586 = vmax.f32 %v564, 0.0
        %v587 = vmax.f32 %v569, 0.0
        %v588 = vmax.f32 %v572, 0.0
        %v589 = vmax.f32 %v577, 0.0
        %v590 = vmax.f32 %v580, 0.0
        %v591 = vpack.c.bf16 %v584, %v583
        %v592 = vpack.c.bf16 %v586, %v585
        %v593 = vpack.c.bf16 %v588, %v587
        %v594 = vpack.c.bf16 %v590, %v589
        %v595 = vld [vmem:[%s4] sm:$0xf]
        %v596 = vld [vmem:[%s4 + $0x4] sm:$0xf]
        %v597 = vld [vmem:[%s4 + $0x8] sm:$0xf]
        %v598 = vld [vmem:[%s4 + $0xc] sm:$0xf]
        %v599 = vld [vmem:[%s5] sm:$0xf]
        %v600 = vld [vmem:[%s5 + $0x4] sm:$0xf]
        %v601 = vld [vmem:[%s5 + $0x8] sm:$0xf]
        %v602 = vld [vmem:[%s5 + $0xc] sm:$0xf]
        %v607 = vunpack.c.l.b16 %v599
        %v608 = vunpack.c.l.b16 %v600
        %v609 = vunpack.c.l.b16 %v601
        %v610 = vunpack.c.l.b16 %v602
        %v611 = vpack.c.b16 %v608, %v607
        %v612 = vpack.c.b16 %v610, %v609
        %vm613 = vcmask 64512
        %v615 = vsel %vm613, %v611, 0
        %v618 = vsel %vm613, %v612, 0
        %v621 = vsel %vm613, %v397, 0
        %v624 = vsel %vm613, %v398, 0
        %v627 = vsel %vm613, %v399, 0
        %v630 = vsel %vm613, %v400, 0
        %v633 = vsel %vm613, %v401, 0
        %v636 = vsel %vm613, %v402, 0
        %v639 = vsel %vm613, %v403, 0
        %v642 = vsel %vm613, %v404, 0
        %644 = vmatprep.subr.bf16.mxu0 0
        %645 = vmatpush1.bf16.xpose.msra.mxu0 %v621
        %646 = vmatprep.subr.bf16.mxu0 0
        %647 = vmatpush1.bf16.xpose.msra.mxu0 %v624
        %648 = vmatprep.subr.bf16.mxu0 0
        %649 = vmatpush1.bf16.xpose.msra.mxu0 %v627
        %650 = vmatprep.subr.bf16.mxu0 0
        %651 = vmatpush1.bf16.xpose.msra.mxu0 %v630
        %652 = vmatprep.subr.bf16.mxu0 0
        %653 = vmatpush1.bf16.xpose.msra.mxu0 %v633
        %654 = vmatprep.subr.bf16.mxu0 0
        %655 = vmatpush1.bf16.xpose.msra.mxu0 %v636
        %656 = vmatprep.subr.bf16.mxu0 0
        %657 = vmatpush1.bf16.xpose.msra.mxu0 %v639
        %658 = vmatprep.subr.bf16.mxu0 0
        %659 = vmatpush1.bf16.xpose.msra.mxu0 %v642
        %660 = vmatprep.subr.bf16.mxu0 0
        %661 = vmatpush1.bf16.xpose.msra.mxu0 0
        %662 = vmatprep.subr.bf16.mxu0 0
        %663 = vmatpush1.bf16.xpose.msra.mxu0 0
        %664 = vmatprep.subr.bf16.mxu0 0
        %665 = vmatpush1.bf16.xpose.msra.mxu0 0
        %666 = vmatprep.subr.bf16.mxu0 0
        %667 = vmatpush1.bf16.xpose.msra.mxu0 0
        %668 = vmatprep.subr.bf16.mxu0 0
        %669 = vmatpush1.bf16.xpose.msra.mxu0 0
        %670 = vmatprep.subr.bf16.mxu0 0
        %671 = vmatpush1.bf16.xpose.msra.mxu0 0
        %672 = vmatprep.subr.bf16.mxu0 0
        %673 = vmatpush1.bf16.xpose.msra.mxu0 0
        %674 = vmatprep.subr.bf16.mxu0 0
        %675 = vmatpush1.bf16.xpose.msra.mxu0 0
        %676 = vmatprep.mubr.bf16.mxu0 0
        %677 = vmatmul.mubr.bf16.gmra.mrb[0].mxu0 %v615
        %v678 = vpop.f32.mrb[0].mxu0
        %v679 = vadd.f32 0.0, %v678
        %v680 = vpop.f32.mrb[0].mxu0
        %v681 = vpop.f32.mrb[0].mxu0
        %v682 = vadd.f32 0.0, %v681
        %v683 = vpop.f32.mrb[0].mxu0
        %684 = vmatprep.mubr.bf16.mxu0 0
        %685 = vmatmul.mubr.bf16.gmra.mrb[0].mxu0 %v618
        %v686 = vpop.f32.mrb[0].mxu0
        %v687 = vadd.f32 0.0, %v686
        %v688 = vpop.f32.mrb[0].mxu0
        %v689 = vpop.f32.mrb[0].mxu0
        %v690 = vadd.f32 0.0, %v689
        %v691 = vpop.f32.mrb[0].mxu0
        %692 = vdwg.mxu0
        %v697 = vunpack.c.l.b16 %v595
        %v698 = vunpack.c.l.b16 %v596
        %v699 = vunpack.c.l.b16 %v597
        %v700 = vunpack.c.l.b16 %v598
        %v701 = vpack.c.b16 %v698, %v697
        %v702 = vpack.c.b16 %v700, %v699
        %vm703 = vcmask 523264
        %v705 = vsel %vm703, %v701, 0
        %v708 = vsel %vm703, %v702, 0
        %710 = vmatprep.subr.bf16.mxu0 0
        %711 = vmatpush1.bf16.msra.mxu0 %v591
        %712 = vmatprep.subr.bf16.mxu0 0
        %713 = vmatpush1.bf16.msra.mxu0 %v592
        %714 = vmatprep.subr.bf16.mxu0 0
        %715 = vmatpush1.bf16.msra.mxu0 %v593
        %716 = vmatprep.subr.bf16.mxu0 0
        %717 = vmatpush1.bf16.msra.mxu0 %v594
        %718 = vmatprep.subr.bf16.mxu0 0
        %719 = vmatpush1.bf16.msra.mxu0 0
        %720 = vmatprep.subr.bf16.mxu0 0
        %721 = vmatpush1.bf16.msra.mxu0 0
        %722 = vmatprep.subr.bf16.mxu0 0
        %723 = vmatpush1.bf16.msra.mxu0 0
        %724 = vmatprep.subr.bf16.mxu0 0
        %725 = vmatpush1.bf16.msra.mxu0 0
        %726 = vmatprep.subr.bf16.mxu0 0
        %727 = vmatpush1.bf16.msra.mxu0 0
        %728 = vmatprep.subr.bf16.mxu0 0
        %729 = vmatpush1.bf16.msra.mxu0 0
        %730 = vmatprep.subr.bf16.mxu0 0
        %731 = vmatpush1.bf16.msra.mxu0 0
        %732 = vmatprep.subr.bf16.mxu0 0
        %733 = vmatpush1.bf16.msra.mxu0 0
        %734 = vmatprep.subr.bf16.mxu0 0
        %735 = vmatpush1.bf16.msra.mxu0 0
        %736 = vmatprep.subr.bf16.mxu0 0
        %737 = vmatpush1.bf16.msra.mxu0 0
        %738 = vmatprep.subr.bf16.mxu0 0
        %739 = vmatpush1.bf16.msra.mxu0 0
        %740 = vmatprep.subr.bf16.mxu0 0
        %741 = vmatpush1.bf16.msra.mxu0 0
        %742 = vmatprep.mubr.bf16.mxu0 0
        %743 = vmatmul.mubr.bf16.gmra.mrb[0].mxu0 %v705
        %v744 = vpop.f32.mrb[0].mxu0
        %v745 = vadd.f32 %v679, %v744
        %v746 = vpop.f32.mrb[0].mxu0
        %v747 = vpop.f32.mrb[0].mxu0
        %v748 = vadd.f32 %v682, %v747
        %v749 = vpop.f32.mrb[0].mxu0
        %750 = vmatprep.mubr.bf16.mxu0 0
        %751 = vmatmul.mubr.bf16.gmra.mrb[0].mxu0 %v708
        %v752 = vpop.f32.mrb[0].mxu0
        %v753 = vadd.f32 %v687, %v752
        %v754 = vpop.f32.mrb[0].mxu0
        %v755 = vpop.f32.mrb[0].mxu0
        %v756 = vadd.f32 %v690, %v755
        %v757 = vpop.f32.mrb[0].mxu0
        %758 = vdwg.mxu0
        %v759 = vld [vmem:[%s6] sm:$0xff]
        %v760 = vld [vmem:[%s6 + $0x8] sm:$0xff]
        %v761 = vld [vmem:[%s6 + $0x10] sm:$0xff]
        %v762 = vld [vmem:[%s6 + $0x18] sm:$0xff]
        %764 = vset.pattern.permute.xlu0 0
        %765 = vperm.xlu0 %764, %v759
        %v766 = vpop.permute.xlu0 %765
        %769 = vset.pattern.permute.xlu0 0
        %770 = vperm.xlu0 %769, %v760
        %v771 = vpop.permute.xlu0 %770
        %774 = vset.pattern.permute.xlu0 0
        %775 = vperm.xlu0 %774, %v761
        %v776 = vpop.permute.xlu0 %775
        %779 = vset.pattern.permute.xlu0 0
        %780 = vperm.xlu0 %779, %v762
        %v781 = vpop.permute.xlu0 %780
        %v783 = vadd.f32 %v745, %v766
        %v784 = vadd.f32 %v748, %v771
        %v785 = vadd.f32 %v753, %v776
        %v786 = vadd.f32 %v756, %v781
        %v787 = vmax.f32 %v783, 0.0
        %v788 = vmax.f32 %v784, 0.0
        %v789 = vmax.f32 %v785, 0.0
        %v790 = vmax.f32 %v786, 0.0
        %v791 = vld [vmem:[%s7] sm:$0xff]
        %v792 = vld [vmem:[%s7 + $0x8] sm:$0xff]
        %v793 = vld [vmem:[%s7 + $0x10] sm:$0xff]
        %v794 = vld [vmem:[%s7 + $0x18] sm:$0xff]
        %796 = vset.pattern.permute.xlu0 0
        %797 = vperm.xlu0 %796, %v791
        %v798 = vpop.permute.xlu0 %797
        %801 = vset.pattern.permute.xlu0 0
        %802 = vperm.xlu0 %801, %v792
        %v803 = vpop.permute.xlu0 %802
        %806 = vset.pattern.permute.xlu0 0
        %807 = vperm.xlu0 %806, %v793
        %v808 = vpop.permute.xlu0 %807
        %811 = vset.pattern.permute.xlu0 0
        %812 = vperm.xlu0 %811, %v794
        %v813 = vpop.permute.xlu0 %812
        %v815 = vmul.f32 %v787, %v798
        %v816 = vmul.f32 %v788, %v803
        %v817 = vmul.f32 %v789, %v808
        %v818 = vmul.f32 %v790, %v813
        %v819 = vadd.f32 %v815, %v816
        %v820 = vadd.f32 %v819, %v817
        %v821 = vadd.f32 %v820, %v818
        %v822 = vrot.slane %v821, 4
        %v823 = vadd.f32 %v821, %v822
        %v824 = vrot.slane %v823, 2
        %v825 = vadd.f32 %v823, %v824
        %v826 = vrot.slane %v825, 1
        %v827 = vadd.f32 %v825, %v826
        %v828 = vld [vmem:[#allocation2] sm:$0x1]
        %830 = vset.pattern.permute.xlu0 0
        %831 = vperm.xlu0 %830, %v828
        %v832 = vpop.permute.xlu0 %831
        %v834 = vlaneseq
        %v835 = vshrl.u32 %v834, 7
        %v836 = vsub.s32 0, %v835
        %v837 = vrot.slane %v832, %v836
        %v838 = vadd.f32 %v827, %v837
        %839 = vst [vmem:[%s343] sm:$0x1] %v838
        %s840 = sand.u32 %s232, 1
        %s841 = scalar_lea.sflag [#allocation4], %s840
        %s842 = sand.u32 %s232, 1
        %s843 = scalar_lea.vmem [#allocation3], %s842
        // Predicated region
        $region57: #{tpu_custom_call.1} parent=55 // pred_check
          %p844 = pneg %p242
        $region58: #{tpu_custom_call.1} parent=55 // pred_check_branch
          %846 = sbr.rel (%p844) target = $region60
        $region59: #{tpu_custom_call.1} parent=55 // pred_region
          %s848 = ssub.s32 16, 16
          %849 = vsyncadd %s841, %s848
          %s850 = smul.addr %s25, 16
          %s851 = scalar_lea.hbm %s9, %s850
          %s853 = sshll.u32 %s843, 4
          %s854 = int_to_ptr.vmem [resolvable:$true] %s853
          %856 = dma.vmem_to_hbm [thread:$0]  %s854, 16, %s851, %s841
        $region60: #{tpu_custom_call.1} parent=55 // pred_fallthru
          _
      $region56: #{tpu_custom_call.1} parent=5 // pred_fallthru
        _
      %p857 = scmp.le.s32.totalorder 2, %s20
      // Predicated region
      $region61: #{tpu_custom_call.1} parent=5 // pred_check
        %p858 = pneg %p857
      $region62: #{tpu_custom_call.1} parent=5 // pred_check_branch
        %860 = sbr.rel (%p858) target = $region64
      $region63: #{tpu_custom_call.1} parent=5 // pred_region
        %s861 = ssub.s32 %s20, 2
        // Predicated region
        $region65: #{tpu_custom_call.1} parent=63 // pred_check
          %p862 = pneg %p248
        $region66: #{tpu_custom_call.1} parent=63 // pred_check_branch
          %864 = sbr.rel (%p862) target = $region68
        $region67: #{tpu_custom_call.1} parent=63 // pred_region
          %s865 = sand.u32 %s233, 1
          %s866 = scalar_lea.sflag [#allocation4], %s865
          %s867 = sand.u32 %s233, 1
          %s868 = scalar_lea.vmem [#allocation3], %s867
          %869 = dma.done %s866, 16
        $region68: #{tpu_custom_call.1} parent=63 // pred_fallthru
          _
      $region64: #{tpu_custom_call.1} parent=5 // pred_fallthru
        _
    $region6: #{tpu_custom_call.1} parent=1 // loop_footer
      %s24 = sadd.s32 1, %s20
    $region7: #{tpu_custom_call.1} parent=1 // loop_footer_branch
      %19 = sbr.rel target = $region3
    $region8: #{tpu_custom_call.1} parent=1 // loop_exit
      _
    %870 = vsyncpa [#allocation4], 1
    %s871 = scalar_lea.sflag [#allocation4], 1
    %872 = vsyncpa %s871, 1

</llo_original>
